<compile_context>
chip_gen: v5e
topology: v5e:2x2
jax: 0.10.0
libtpu: 0.0.40
codegen_flags: <defaults>
</compile_context>

<pallas_src>
import jax
import jax.numpy as jnp
from jax.experimental import pallas as pl
from jax.experimental.pallas import tpu as pltpu


NEG_SLOPE = 0.01  # nn.LeakyReLU default negative_slope


# --------------------------------------------------------------------------- #
# hardware-aware sizing
# --------------------------------------------------------------------------- #
def _vmem_capacity_bytes():
    """Per-core VMEM capacity; conservative 64 MiB (v7x floor) if query fails."""
    try:
        return int(pltpu.get_tpu_info().vmem_capacity_bytes)
    except Exception:
        return 64 * 1024 * 1024


def _pick_tile_h(h, w, cin, cout, in_isz, out_isz, batch, budget_bytes):
    """Row tile for the fused kernel.

    Constraints: th divides H; (2*th) % 8 == 0 and (th*w) % 128 == 0 unless
    th == H (full extent is always a legal block), so every block is
    (8,128)-legal and every store stays lane dense.  Prefers the largest tile
    that still yields >= 4 total grid steps and fits the VMEM budget.
    """
    def vmem_need(th):
        lanes = th * w
        x_blk = cin * lanes * in_isz
        o_blk = 4 * cout * lanes * out_isz
        interm = 3 * 4 * cout * lanes * 4          # f32 acc + interleave temps
        return 2 * (x_blk + o_blk) + interm        # 2x: double-buffered blocks

    cands = [h]                                    # full extent always legal
    for t in range(4, h, 4):
        if h % t == 0 and (t * w) % 128 == 0:
            cands.append(t)
    fitting = sorted({c for c in cands if vmem_need(c) <= budget_bytes})
    if not fitting:
        fitting = [min(cands)]
    deep = [c for c in fitting if batch * (h // c) >= 4]
    return max(deep) if deep else max(fitting)


def _pick_tile_s(hw, cin, n4, in_isz, out_isz, batch, budget_bytes):
    """Flattened-spatial tile for the split kernel: a multiple of 128 that
    divides H*W (or the full extent), sized like _pick_tile_h."""
    def vmem_need(ts):
        return 2 * (cin * ts * in_isz + n4 * ts * out_isz) + n4 * ts * 4

    cands = [hw]
    t = 128
    while t < hw:
        if hw % t == 0:
            cands.append(t)
        t += 128
    fitting = sorted({c for c in cands if vmem_need(c) <= budget_bytes})
    if not fitting:
        fitting = [min(cands)]
    deep = [c for c in fitting if batch * (hw // c) >= 4]
    return max(deep) if deep else max(fitting)


# --------------------------------------------------------------------------- #
# kernel bodies
# --------------------------------------------------------------------------- #
def _contract(x, w, use_mxu):
    """acc[r, m] = sum_ci w[r, ci] * x[ci, m], accumulated in f32."""
    if use_mxu:
        return jnp.dot(w, x, preferred_element_type=jnp.float32)
    # Tiny Cin: a K<32 matmul uses <2% of the MXU and just adds push/pop latency.
    # Broadcast FMAs on the VPU; two partial accumulators break the serial chain.
    xf = x.astype(jnp.float32)
    wf = w.astype(jnp.float32)
    cin = xf.shape[0]
    acc0 = wf[:, 0:1] * xf[0:1, :]
    acc1 = None
    for ci in range(1, cin):
        term = wf[:, ci:ci + 1] * xf[ci:ci + 1, :]
        if ci % 2:
            acc1 = term if acc1 is None else acc1 + term
        else:
            acc0 = acc0 + term
    return acc0 if acc1 is None else acc0 + acc1


def _make_fused_kernel(cout, th, w_in, use_mxu):
    """Kernel that writes the NCHW output block directly (tap interleave in VMEM)."""
    def kernel(x_ref, w_ref, b_ref, o_ref):
        # x_ref: (1, Cin, th*W)        spatial (row-major i, j) on lanes
        # w_ref: (4*Cout, Cin)         rows ordered (di, dj, co); BN scale folded
        # b_ref: (4*Cout, 1)           folded BN bias (beta - mean*scale)
        # o_ref: (1, Cout, 2*th, 2*W)  NCHW output block
        acc = _contract(x_ref[0], w_ref[...], use_mxu)            # (4*Cout, th*W)
        y = acc + b_ref[...].astype(jnp.float32)
        y = jnp.maximum(y, NEG_SLOPE * y)                         # LeakyReLU
        taps = [y[t * cout:(t + 1) * cout, :] for t in range(4)]  # (di, dj) major
        l = th * w_in

        def interleave_lanes(a, b):          # dj interleave: col 2m+dj <- tap dj
            return jnp.stack([a, b], axis=-1).reshape(cout, 2 * l)

        u0 = interleave_lanes(taps[0], taps[1])                   # di = 0 rows
        u1 = interleave_lanes(taps[2], taps[3])                   # di = 1 rows
        v0 = u0.reshape(cout, th, 2 * w_in)
        v1 = u1.reshape(cout, th, 2 * w_in)
        # di interleave on the row (sublane) axis, then one lane-dense store.
        out = jnp.stack([v0, v1], axis=2).reshape(cout, 2 * th, 2 * w_in)
        o_ref[0] = out.astype(o_ref.dtype)
    return kernel


def _make_split_kernel(use_mxu):
    """v2-style kernel: lane-dense tap-major output; interleave done by XLA."""
    def kernel(x_ref, w_ref, b_ref, o_ref):
        # x_ref: (1, Cin, TS); w_ref: (4*Cout, Cin); b_ref: (4*Cout, 1)
        # o_ref: (1, 4*Cout, TS)
        acc = _contract(x_ref[0], w_ref[...], use_mxu)
        y = acc + b_ref[...].astype(jnp.float32)
        y = jnp.maximum(y, NEG_SLOPE * y)
        o_ref[0] = y.astype(o_ref.dtype)
    return kernel


# --------------------------------------------------------------------------- #
# wrapper
# --------------------------------------------------------------------------- #
def upsample_bn_relu(x_nchw, weight, gamma, beta, running_mean, running_var,
                     eps=1e-5, io_dtype=None, out_dtype=None, mode="auto"):
    """LeakyReLU(BN_eval(ConvTranspose2d(x)))  with k=2, s=2, p=0, bias=False.

    x_nchw: (B, Cin, H, W); weight: (Cin, Cout, 2, 2) (PyTorch layout).
    io_dtype: dtype fed to the kernel (bf16 halves HBM traffic on v6e/v7x;
              accumulation is always f32).  out_dtype: output dtype.
    mode: "fused" -> kernel writes NCHW directly (tap interleave in VMEM),
          "split" -> tap-major kernel + one XLA permute,
          "auto"  -> try fused, fall back to split if lowering is unsupported.
    Returns (B, Cout, 2H, 2W).
    """
    B, Cin, H, W = x_nchw.shape
    Cout = weight.shape[1]
    kH, kW = weight.shape[2], weight.shape[3]
    assert (kH, kW) == (2, 2), "kernel implements the k=2, s=2, p=0 transposed conv"
    N4 = 4 * Cout
    HW = H * W

    io_dtype = x_nchw.dtype if io_dtype is None else jnp.dtype(io_dtype)
    out_dtype = x_nchw.dtype if out_dtype is None else jnp.dtype(out_dtype)
    in_isz = jnp.dtype(io_dtype).itemsize
    out_isz = jnp.dtype(out_dtype).itemsize

    # ---- fold eval-mode BN into the conv weights / a per-channel bias ----
    inv_std = 1.0 / jnp.sqrt(running_var + eps)
    scale_c = gamma * inv_std                             # (Cout,)
    bias_c = beta - running_mean * scale_c                # (Cout,)
    w_eff = weight * scale_c[None, :, None, None]         # (Cin, Cout, 2, 2)
    # rows ordered (di, dj, co): wT[(2*di+dj)*Cout + co, ci] = W_eff[ci, co, di, dj]
    wT = jnp.transpose(w_eff, (2, 3, 1, 0)).reshape(N4, Cin).astype(io_dtype)
    bias_full = jnp.tile(bias_c, 4).reshape(N4, 1).astype(jnp.float32)

    # ---- input: pure reshape of NCHW (no wrapper transpose) ----
    x3 = x_nchw.reshape(B, Cin, HW).astype(io_dtype)

    use_mxu = Cin >= 32                     # tiny contractions stay on the VPU
    capacity = _vmem_capacity_bytes()
    budget = capacity // 4                  # block budget (double-buffer + temps)
    vmem_limit = capacity // 2
    cost = pl.CostEstimate(
        flops=2 * B * N4 * Cin * HW,
        bytes_accessed=B * Cin * HW * in_isz + B * N4 * HW * out_isz
        + N4 * (Cin + 1) * 4,
        transcendentals=0,
    )

    def _call_fused():
        tH = _pick_tile_h(H, W, Cin, Cout, in_isz, out_isz, B, budget)
        grid = (B, H // tH)
        return pl.pallas_call(
            _make_fused_kernel(Cout, tH, W, use_mxu),
            out_shape=jax.ShapeDtypeStruct((B, Cout, 2 * H, 2 * W), out_dtype),
            grid_spec=pltpu.PrefetchScalarGridSpec(
                num_scalar_prefetch=0,
                grid=grid,
                in_specs=[
                    pl.BlockSpec((1, Cin, tH * W), lambda b, s: (b, 0, s)),
                    pl.BlockSpec((N4, Cin), lambda b, s: (0, 0)),
                    pl.BlockSpec((N4, 1), lambda b, s: (0, 0)),
                ],
                out_specs=pl.BlockSpec((1, Cout, 2 * tH, 2 * W),
                                       lambda b, s: (b, 0, s, 0)),
            ),
            compiler_params=pltpu.CompilerParams(
                dimension_semantics=("parallel", "parallel"),
                vmem_limit_bytes=vmem_limit,
            ),
            cost_estimate=cost,
        )(x3, wT, bias_full)

    def _call_split():
        TS = _pick_tile_s(HW, Cin, N4, in_isz, out_isz, B, budget)
        grid = (B, HW // TS)
        out_k = pl.pallas_call(
            _make_split_kernel(use_mxu),
            out_shape=jax.ShapeDtypeStruct((B, N4, HW), out_dtype),
            grid_spec=pltpu.PrefetchScalarGridSpec(
                num_scalar_prefetch=0,
                grid=grid,
                in_specs=[
                    pl.BlockSpec((1, Cin, TS), lambda b, s: (b, 0, s)),
                    pl.BlockSpec((N4, Cin), lambda b, s: (0, 0)),
                    pl.BlockSpec((N4, 1), lambda b, s: (0, 0)),
                ],
                out_specs=pl.BlockSpec((1, N4, TS), lambda b, s: (b, 0, s)),
            ),
            compiler_params=pltpu.CompilerParams(
                dimension_semantics=("parallel", "parallel"),
                vmem_limit_bytes=vmem_limit,
            ),
            cost_estimate=cost,
        )(x3, wT, bias_full)
        # (di, dj) tap scatter back to NCHW -- one XLA permute over the output.
        out6 = out_k.reshape(B, 2, 2, Cout, H, W)          # [b, di, dj, co, i, j]
        out = jnp.transpose(out6, (0, 3, 4, 1, 5, 2))      # [b, co, i, di, j, dj]
        return out.reshape(B, Cout, 2 * H, 2 * W)

    if mode == "fused":
        return _call_fused()
    if mode == "split":
        return _call_split()
    # mode == "auto": prefer the single-pass fused kernel; its in-VMEM tap
    # interleave uses lane-crossing reshapes whose Mosaic support varies with
    # the toolchain, so fall back to the split kernel if lowering is rejected.
    try:
        return _call_fused()
    except Exception:
        return _call_split()


# --------------------------------------------------------------------------- #
# pure-JAX reference (same math, no Pallas)
# --------------------------------------------------------------------------- #
def _reference(x_nchw, weight, gamma, beta, running_mean, running_var, eps=1e-5):
    B, Cin, H, W = x_nchw.shape
    Cout = weight.shape[1]
    y = jnp.einsum("ncij,copq->noipjq", x_nchw, weight,
                   precision=jax.lax.Precision.HIGHEST)   # ConvT k=2 s=2 p=0
    y = y.reshape(B, Cout, 2 * H, 2 * W)
    inv_std = 1.0 / jnp.sqrt(running_var + eps)
    scale = (gamma * inv_std)[None, :, None, None]
    bias = (beta - running_mean * gamma * inv_std)[None, :, None, None]
    y = y * scale + bias
    return jnp.where(y > 0, y, NEG_SLOPE * y)


if __name__ == "__main__":
    key = jax.random.PRNGKey(0)
    B, Cin, H, W = 2, 4, 16, 16
    Cout = 8

    k_x, k_w, k_g, k_b, k_m, k_v = jax.random.split(key, 6)
    x = jax.random.normal(k_x, (B, Cin, H, W), dtype=jnp.float32)
    # ConvTranspose2d weight layout: (in_planes, out_planes, kH, kW)
    weight = 0.1 * jax.random.normal(k_w, (Cin, Cout, 2, 2), dtype=jnp.float32)
    gamma = 1.0 + 0.1 * jax.random.normal(k_g, (Cout,), dtype=jnp.float32)
    beta = 0.1 * jax.random.normal(k_b, (Cout,), dtype=jnp.float32)
    running_mean = 0.1 * jax.random.normal(k_m, (Cout,), dtype=jnp.float32)
    running_var = jnp.abs(1.0 + 0.1 * jax.random.normal(k_v, (Cout,), dtype=jnp.float32))

    ref = _reference(x, weight, gamma, beta, running_mean, running_var)

    # primary path: fused NCHW-writing kernel (auto falls back if unsupported)
    out = upsample_bn_relu(x, weight, gamma, beta, running_mean, running_var,
                           mode="auto")
    out = jax.block_until_ready(out)
    assert out.shape == (B, Cout, 2 * H, 2 * W), out.shape
    assert jnp.allclose(out, ref, atol=1e-4, rtol=1e-4), \
        float(jnp.max(jnp.abs(out - ref)))

    # also validate the split (fallback) kernel explicitly
    out_split = jax.block_until_ready(
        upsample_bn_relu(x, weight, gamma, beta, running_mean, running_var,
                         mode="split"))
    assert jnp.allclose(out_split, ref, atol=1e-4, rtol=1e-4), \
        float(jnp.max(jnp.abs(out_split - ref)))

    print("KERNEL_OK")
</pallas_src>

<mosaic_0001>
module attributes {stable_mosaic.version = 11 : i64} {
  func.func @kernel(%arg0: i32, %arg1: i32, %arg2: memref<1x4x128xf32, #tpu.memory_space<vmem>>, %arg3: memref<32x4xf32, #tpu.memory_space<vmem>>, %arg4: memref<32x1xf32, #tpu.memory_space<vmem>>, %arg5: memref<1x8x16x32xf32, #tpu.memory_space<vmem>>) attributes {dimension_semantics = [#tpu.dimension_semantics<parallel>, #tpu.dimension_semantics<parallel>], iteration_bounds = array<i64: 2, 2>, scalar_prefetch = 0 : i64, scratch_operands = 0 : i64, tpu.core_type = #tpu.core_type<tc>, window_params = [{transform_indices = @transform_0, window_bounds = array<i64: 1, 4, 128>}, {pipeline_mode = #tpu.pipeline_mode<synchronous>, transform_indices = @transform_1, window_bounds = array<i64: 32, 4>}, {pipeline_mode = #tpu.pipeline_mode<synchronous>, transform_indices = @transform_2, window_bounds = array<i64: 32, 1>}, {transform_indices = @transform_3, window_bounds = array<i64: 1, 8, 16, 32>}]} {
    %c0 = arith.constant 0 : index
    %c0_0 = arith.constant 0 : index
    %c0_1 = arith.constant 0 : index
    %0 = vector.load %arg2[%c0, %c0_0, %c0_1] : memref<1x4x128xf32, #tpu.memory_space<vmem>>, vector<1x4x128xf32>
    %1 = vector.shape_cast %0 : vector<1x4x128xf32> to vector<4x128xf32>
    %c0_2 = arith.constant 0 : index
    %c0_3 = arith.constant 0 : index
    %2 = vector.load %arg3[%c0_2, %c0_3] : memref<32x4xf32, #tpu.memory_space<vmem>>, vector<32x4xf32>
    %3 = vector.extract_strided_slice %2 {offsets = [0, 0], sizes = [32, 1], strides = [1, 1]} : vector<32x4xf32> to vector<32x1xf32>
    %4 = vector.extract_strided_slice %1 {offsets = [0, 0], sizes = [1, 128], strides = [1, 1]} : vector<4x128xf32> to vector<1x128xf32>
    %5 = vector.broadcast %3 : vector<32x1xf32> to vector<32x128xf32>
    %6 = vector.broadcast %4 : vector<1x128xf32> to vector<32x128xf32>
    %7 = arith.mulf %5, %6 : vector<32x128xf32>
    %8 = vector.extract_strided_slice %2 {offsets = [0, 1], sizes = [32, 1], strides = [1, 1]} : vector<32x4xf32> to vector<32x1xf32>
    %9 = vector.extract_strided_slice %1 {offsets = [1, 0], sizes = [1, 128], strides = [1, 1]} : vector<4x128xf32> to vector<1x128xf32>
    %10 = vector.broadcast %8 : vector<32x1xf32> to vector<32x128xf32>
    %11 = vector.broadcast %9 : vector<1x128xf32> to vector<32x128xf32>
    %12 = arith.mulf %10, %11 : vector<32x128xf32>
    %13 = vector.extract_strided_slice %2 {offsets = [0, 2], sizes = [32, 1], strides = [1, 1]} : vector<32x4xf32> to vector<32x1xf32>
    %14 = vector.extract_strided_slice %1 {offsets = [2, 0], sizes = [1, 128], strides = [1, 1]} : vector<4x128xf32> to vector<1x128xf32>
    %15 = vector.broadcast %13 : vector<32x1xf32> to vector<32x128xf32>
    %16 = vector.broadcast %14 : vector<1x128xf32> to vector<32x128xf32>
    %17 = arith.mulf %15, %16 : vector<32x128xf32>
    %18 = arith.addf %7, %17 : vector<32x128xf32>
    %19 = vector.extract_strided_slice %2 {offsets = [0, 3], sizes = [32, 1], strides = [1, 1]} : vector<32x4xf32> to vector<32x1xf32>
    %20 = vector.extract_strided_slice %1 {offsets = [3, 0], sizes = [1, 128], strides = [1, 1]} : vector<4x128xf32> to vector<1x128xf32>
    %21 = vector.broadcast %19 : vector<32x1xf32> to vector<32x128xf32>
    %22 = vector.broadcast %20 : vector<1x128xf32> to vector<32x128xf32>
    %23 = arith.mulf %21, %22 : vector<32x128xf32>
    %24 = arith.addf %12, %23 : vector<32x128xf32>
    %25 = arith.addf %18, %24 : vector<32x128xf32>
    %c0_4 = arith.constant 0 : index
    %c0_5 = arith.constant 0 : index
    %26 = vector.load %arg4[%c0_4, %c0_5] : memref<32x1xf32, #tpu.memory_space<vmem>>, vector<32x1xf32>
    %27 = vector.broadcast %26 : vector<32x1xf32> to vector<32x128xf32>
    %28 = arith.addf %25, %27 : vector<32x128xf32>
    %cst = arith.constant 0.00999999977 : f32
    %29 = vector.broadcast %cst : f32 to vector<32x128xf32>
    %30 = arith.mulf %29, %28 : vector<32x128xf32>
    %31 = arith.maximumf %28, %30 : vector<32x128xf32>
    %32 = vector.extract_strided_slice %31 {offsets = [0, 0], sizes = [8, 128], strides = [1, 1]} : vector<32x128xf32> to vector<8x128xf32>
    %33 = vector.extract_strided_slice %31 {offsets = [8, 0], sizes = [8, 128], strides = [1, 1]} : vector<32x128xf32> to vector<8x128xf32>
    %34 = vector.extract_strided_slice %31 {offsets = [16, 0], sizes = [8, 128], strides = [1, 1]} : vector<32x128xf32> to vector<8x128xf32>
    %35 = vector.extract_strided_slice %31 {offsets = [24, 0], sizes = [8, 128], strides = [1, 1]} : vector<32x128xf32> to vector<8x128xf32>
    %36 = vector.shape_cast %32 : vector<8x128xf32> to vector<8x128x1xf32>
    %37 = vector.shape_cast %33 : vector<8x128xf32> to vector<8x128x1xf32>
    %38 = tpu.concatenate %36, %37 in 2 : vector<8x128x1xf32>, vector<8x128x1xf32> -> vector<8x128x2xf32>
    %39 = vector.shape_cast %38 : vector<8x128x2xf32> to vector<8x256xf32>
    %40 = vector.shape_cast %34 : vector<8x128xf32> to vector<8x128x1xf32>
    %41 = vector.shape_cast %35 : vector<8x128xf32> to vector<8x128x1xf32>
    %42 = tpu.concatenate %40, %41 in 2 : vector<8x128x1xf32>, vector<8x128x1xf32> -> vector<8x128x2xf32>
    %43 = vector.shape_cast %42 : vector<8x128x2xf32> to vector<8x256xf32>
    %44 = vector.shape_cast %39 : vector<8x256xf32> to vector<8x8x32xf32>
    %45 = vector.shape_cast %43 : vector<8x256xf32> to vector<8x8x32xf32>
    %46 = vector.shape_cast %44 : vector<8x8x32xf32> to vector<8x8x1x32xf32>
    %47 = vector.shape_cast %45 : vector<8x8x32xf32> to vector<8x8x1x32xf32>
    %48 = tpu.concatenate %46, %47 in 2 : vector<8x8x1x32xf32>, vector<8x8x1x32xf32> -> vector<8x8x2x32xf32>
    %49 = vector.shape_cast %48 : vector<8x8x2x32xf32> to vector<8x16x32xf32>
    %c0_6 = arith.constant 0 : index
    %c0_7 = arith.constant 0 : index
    %c0_8 = arith.constant 0 : index
    %c0_9 = arith.constant 0 : index
    %50 = vector.load %arg5[%c0_6, %c0_7, %c0_8, %c0_9] : memref<1x8x16x32xf32, #tpu.memory_space<vmem>>, vector<1x8x16x32xf32>
    %51 = vector.shape_cast %50 : vector<1x8x16x32xf32> to vector<8x16x32xf32>
    %52 = vector.shape_cast %49 : vector<8x16x32xf32> to vector<1x8x16x32xf32>
    tpu.vector_store %arg5[%c0_6, %c0_7, %c0_8, %c0_9], %52 {strides = array<i32>} : memref<1x8x16x32xf32, #tpu.memory_space<vmem>>, vector<1x8x16x32xf32>,
    return
  }
  func.func @transform_0(%arg0: i32, %arg1: i32) -> (i32, i32, i32) {
    %c0_i32 = arith.constant 0 : i32
    %c0_i32_0 = arith.constant 0 : i32
    return %arg0, %c0_i32, %arg1 : i32, i32, i32
  }
  func.func @transform_1(%arg0: i32, %arg1: i32) -> (i32, i32) {
    %c0_i32 = arith.constant 0 : i32
    %c0_i32_0 = arith.constant 0 : i32
    %c0_i32_1 = arith.constant 0 : i32
    return %c0_i32, %c0_i32_0 : i32, i32
  }
  func.func @transform_2(%arg0: i32, %arg1: i32) -> (i32, i32) {
    %c0_i32 = arith.constant 0 : i32
    %c0_i32_0 = arith.constant 0 : i32
    %c0_i32_1 = arith.constant 0 : i32
    return %c0_i32, %c0_i32_0 : i32, i32
  }
  func.func @transform_3(%arg0: i32, %arg1: i32) -> (i32, i32, i32, i32) {
    %c0_i32 = arith.constant 0 : i32
    %c0_i32_0 = arith.constant 0 : i32
    %c0_i32_1 = arith.constant 0 : i32
    return %arg0, %c0_i32, %arg1, %c0_i32_0 : i32, i32, i32, i32
  }
}

module attributes {stable_mosaic.version = 11 : i64} {
  func.func @kernel(%arg0: i32, %arg1: i32, %arg2: memref<1x4x128xf32, #tpu.memory_space<vmem>>, %arg3: memref<32x4xf32, #tpu.memory_space<vmem>>, %arg4: memref<32x1xf32, #tpu.memory_space<vmem>>, %arg5: memref<1x32x128xf32, #tpu.memory_space<vmem>>) attributes {dimension_semantics = [#tpu.dimension_semantics<parallel>, #tpu.dimension_semantics<parallel>], iteration_bounds = array<i64: 2, 2>, scalar_prefetch = 0 : i64, scratch_operands = 0 : i64, tpu.core_type = #tpu.core_type<tc>, window_params = [{transform_indices = @transform_0, window_bounds = array<i64: 1, 4, 128>}, {pipeline_mode = #tpu.pipeline_mode<synchronous>, transform_indices = @transform_1, window_bounds = array<i64: 32, 4>}, {pipeline_mode = #tpu.pipeline_mode<synchronous>, transform_indices = @transform_2, window_bounds = array<i64: 32, 1>}, {transform_indices = @transform_3, window_bounds = array<i64: 1, 32, 128>}]} {
    %c0 = arith.constant 0 : index
    %c0_0 = arith.constant 0 : index
    %c0_1 = arith.constant 0 : index
    %0 = vector.load %arg2[%c0, %c0_0, %c0_1] : memref<1x4x128xf32, #tpu.memory_space<vmem>>, vector<1x4x128xf32>
    %1 = vector.shape_cast %0 : vector<1x4x128xf32> to vector<4x128xf32>
    %c0_2 = arith.constant 0 : index
    %c0_3 = arith.constant 0 : index
    %2 = vector.load %arg3[%c0_2, %c0_3] : memref<32x4xf32, #tpu.memory_space<vmem>>, vector<32x4xf32>
    %3 = vector.extract_strided_slice %2 {offsets = [0, 0], sizes = [32, 1], strides = [1, 1]} : vector<32x4xf32> to vector<32x1xf32>
    %4 = vector.extract_strided_slice %1 {offsets = [0, 0], sizes = [1, 128], strides = [1, 1]} : vector<4x128xf32> to vector<1x128xf32>
    %5 = vector.broadcast %3 : vector<32x1xf32> to vector<32x128xf32>
    %6 = vector.broadcast %4 : vector<1x128xf32> to vector<32x128xf32>
    %7 = arith.mulf %5, %6 : vector<32x128xf32>
    %8 = vector.extract_strided_slice %2 {offsets = [0, 1], sizes = [32, 1], strides = [1, 1]} : vector<32x4xf32> to vector<32x1xf32>
    %9 = vector.extract_strided_slice %1 {offsets = [1, 0], sizes = [1, 128], strides = [1, 1]} : vector<4x128xf32> to vector<1x128xf32>
    %10 = vector.broadcast %8 : vector<32x1xf32> to vector<32x128xf32>
    %11 = vector.broadcast %9 : vector<1x128xf32> to vector<32x128xf32>
    %12 = arith.mulf %10, %11 : vector<32x128xf32>
    %13 = vector.extract_strided_slice %2 {offsets = [0, 2], sizes = [32, 1], strides = [1, 1]} : vector<32x4xf32> to vector<32x1xf32>
    %14 = vector.extract_strided_slice %1 {offsets = [2, 0], sizes = [1, 128], strides = [1, 1]} : vector<4x128xf32> to vector<1x128xf32>
    %15 = vector.broadcast %13 : vector<32x1xf32> to vector<32x128xf32>
    %16 = vector.broadcast %14 : vector<1x128xf32> to vector<32x128xf32>
    %17 = arith.mulf %15, %16 : vector<32x128xf32>
    %18 = arith.addf %7, %17 : vector<32x128xf32>
    %19 = vector.extract_strided_slice %2 {offsets = [0, 3], sizes = [32, 1], strides = [1, 1]} : vector<32x4xf32> to vector<32x1xf32>
    %20 = vector.extract_strided_slice %1 {offsets = [3, 0], sizes = [1, 128], strides = [1, 1]} : vector<4x128xf32> to vector<1x128xf32>
    %21 = vector.broadcast %19 : vector<32x1xf32> to vector<32x128xf32>
    %22 = vector.broadcast %20 : vector<1x128xf32> to vector<32x128xf32>
    %23 = arith.mulf %21, %22 : vector<32x128xf32>
    %24 = arith.addf %12, %23 : vector<32x128xf32>
    %25 = arith.addf %18, %24 : vector<32x128xf32>
    %c0_4 = arith.constant 0 : index
    %c0_5 = arith.constant 0 : index
    %26 = vector.load %arg4[%c0_4, %c0_5] : memref<32x1xf32, #tpu.memory_space<vmem>>, vector<32x1xf32>
    %27 = vector.broadcast %26 : vector<32x1xf32> to vector<32x128xf32>
    %28 = arith.addf %25, %27 : vector<32x128xf32>
    %cst = arith.constant 0.00999999977 : f32
    %29 = vector.broadcast %cst : f32 to vector<32x128xf32>
    %30 = arith.mulf %29, %28 : vector<32x128xf32>
    %31 = arith.maximumf %28, %30 : vector<32x128xf32>
    %c0_6 = arith.constant 0 : index
    %c0_7 = arith.constant 0 : index
    %c0_8 = arith.constant 0 : index
    %32 = vector.load %arg5[%c0_6, %c0_7, %c0_8] : memref<1x32x128xf32, #tpu.memory_space<vmem>>, vector<1x32x128xf32>
    %33 = vector.shape_cast %32 : vector<1x32x128xf32> to vector<32x128xf32>
    %34 = vector.shape_cast %31 : vector<32x128xf32> to vector<1x32x128xf32>
    tpu.vector_store %arg5[%c0_6, %c0_7, %c0_8], %34 {strides = array<i32>} : memref<1x32x128xf32, #tpu.memory_space<vmem>>, vector<1x32x128xf32>,
    return
  }
  func.func @transform_0(%arg0: i32, %arg1: i32) -> (i32, i32, i32) {
    %c0_i32 = arith.constant 0 : i32
    %c0_i32_0 = arith.constant 0 : i32
    return %arg0, %c0_i32, %arg1 : i32, i32, i32
  }
  func.func @transform_1(%arg0: i32, %arg1: i32) -> (i32, i32) {
    %c0_i32 = arith.constant 0 : i32
    %c0_i32_0 = arith.constant 0 : i32
    %c0_i32_1 = arith.constant 0 : i32
    return %c0_i32, %c0_i32_0 : i32, i32
  }
  func.func @transform_2(%arg0: i32, %arg1: i32) -> (i32, i32) {
    %c0_i32 = arith.constant 0 : i32
    %c0_i32_0 = arith.constant 0 : i32
    %c0_i32_1 = arith.constant 0 : i32
    return %c0_i32, %c0_i32_0 : i32, i32
  }
  func.func @transform_3(%arg0: i32, %arg1: i32) -> (i32, i32, i32) {
    %c0_i32 = arith.constant 0 : i32
    %c0_i32_0 = arith.constant 0 : i32
    return %arg0, %c0_i32, %arg1 : i32, i32, i32
  }
}

</mosaic_0001>

<llo_original>
// kernel: tpu_custom_call.1
$region0: #{tpu_custom_call.1}
  #allocation0 [shape = 'u32[]', space=smem, size = 0x4, offset = 0x4, fixed_abs, tag = 'smem constant byte address 0x4 - core index']
  #allocation1 [shape = 'u32[72,128]{1,0:T(1,128)}', space=vmem, size = 0x9000, scoped, tag = 'internal scratch']
  %s0 = inlined_call_operand.vmem [shape: f32[2,4,256], index: 0, kind: input, shape index: {}]
  %s1 = inlined_call_operand.vmem [shape: f32[32,4], index: 1, kind: input, shape index: {}]
  %s2 = inlined_call_operand.vmem [shape: f32[32,1], index: 2, kind: input, shape index: {}]
  %s3 = inlined_call_operand.hbm [shape: f32[2,32,256], index: 3, kind: output, shape index: {}]
  %s4 = sld [smem:[#allocation0]]
  $region45: #{tpu_custom_call.1} parent=0
    _
  %s6 = ssub.s32 1, %s4
  %s7 = scalar_select 0, %s6, %s4
  $region1: #{tpu_custom_call.1} parent=0
    #allocation2 [shape = 'u8[32768]{0}', space=vmem, size = 0x8000, scoped, tag = 'output window, operand 0']
    #allocation3 [shape = 's32[2]{0}', space=sflag, size = 0x8, scoped, tag = 'scoped memory for tpu_custom_call.1']
    %8 = vsyncpa [#allocation3], 0
    %s9 = scalar_lea.sflag [#allocation3], 1
    %10 = vsyncpa %s9, 0
    loop: start=0, step=1, limit=6
    $region2: #{tpu_custom_call.1} parent=1 // loop_pre_header
      _
    $region3: #{tpu_custom_call.1} parent=1 // loop_header
      %s12 = sphi 0, %s16
      %p13 = scmp.ge.s32.totalorder %s12, 6
      %s19 = sphi 0, %s31
      %s20 = sphi 0, %s27
      %s21 = sphi 0, %s19
      %s22 = sphi 0, %s20
      %s23 = sphi 0, %s21
      %s24 = sphi 0, %s22
      %s36 = sphi 0, %s38
      %s39 = sphi 0, %s36
      %s40 = sphi 0, %s39
      %s56 = sphi 0, %s40
      %s60 = sphi 0, %s60
      %s62 = sphi 0, %s60
      %s63 = sphi 0, %s62
      %s77 = sphi 0, %s63
      %s81 = sphi 0, %s81
      %s83 = sphi 0, %s81
      %s84 = sphi 0, %s83
      %s98 = sphi 0, %s84
      %s106 = sphi 0, %s108
      %s109 = sphi 0, %s106
      %s110 = sphi 0, %s109
      %s126 = sphi 0, %s110
    $region4: #{tpu_custom_call.1} parent=1 // loop_header_branch
      %15 = sbr.rel (%p13) target = $region8
    $region5: #{tpu_custom_call.1} parent=1 // loop_body
      %s17 = ssub.s32 %s12, 1
      %s18 = ssub.s32 %s12, 2
      %s25 = sadd.s32 1, %s20
      %p26 = scmp.ge.s32.totalorder %s25, 2
      %s27 = scalar_select %p26, 0, %s25
      %s28 = sadd.s32 1, %s19
      %s29 = scalar_select %p26, %s28, %s19
      %p30 = scmp.ge.s32.totalorder %s29, 2
      %s31 = scalar_select %p30, 0, %s29
      %s32 = ssub.s32 %s19, %s31
      %s33 = ssub.s32 %s20, %s27
      %s34 = sor.u32 %s32, %s33
      %p35 = scmp.eq.s32.totalorder %s34, 0
      %s37 = sadd.s32 %s36, 1
      %s38 = scalar_select %p35, %s36, %s37
      %p41 = pneg %p35
      %p42 = scmp.eq.s32.totalorder %s12, 3
      %p43 = por %p41, %p42
      %p44 = scmp.ne.s32.totalorder %s36, %s39
      %p45 = scmp.eq.s32.totalorder %s12, 0
      %p46 = por %p44, %p45
      %p47 = scmp.ne.s32.totalorder %s36, %s39
      %p48 = scmp.eq.s32.totalorder %s17, 3
      %p49 = por %p47, %p48
      %p50 = scmp.ne.s32.totalorder %s39, %s40
      %p51 = scmp.eq.s32.totalorder %s17, 0
      %p52 = por %p50, %p51
      %p53 = scmp.ne.s32.totalorder %s39, %s40
      %p54 = scmp.eq.s32.totalorder %s18, 3
      %p55 = por %p53, %p54
      %p57 = scmp.ne.s32.totalorder %s40, %s56
      %p58 = scmp.eq.s32.totalorder %s18, 0
      %p59 = por %p57, %p58
      %s61 = sadd.s32 %s60, 1
      %p64 = scmp.eq.s32.totalorder %s12, 3
      %p65 = scmp.ne.s32.totalorder %s60, %s62
      %p66 = scmp.eq.s32.totalorder %s12, 0
      %p67 = por %p65, %p66
      %p68 = scmp.ne.s32.totalorder %s60, %s62
      %p69 = scmp.eq.s32.totalorder %s17, 3
      %p70 = por %p68, %p69
      %p71 = scmp.ne.s32.totalorder %s62, %s63
      %p72 = scmp.eq.s32.totalorder %s17, 0
      %p73 = por %p71, %p72
      %p74 = scmp.ne.s32.totalorder %s62, %s63
      %p75 = scmp.eq.s32.totalorder %s18, 3
      %p76 = por %p74, %p75
      %p78 = scmp.ne.s32.totalorder %s63, %s77
      %p79 = scmp.eq.s32.totalorder %s18, 0
      %p80 = por %p78, %p79
      %s82 = sadd.s32 %s81, 1
      %p85 = scmp.eq.s32.totalorder %s12, 3
      %p86 = scmp.ne.s32.totalorder %s81, %s83
      %p87 = scmp.eq.s32.totalorder %s12, 0
      %p88 = por %p86, %p87
      %p89 = scmp.ne.s32.totalorder %s81, %s83
      %p90 = scmp.eq.s32.totalorder %s17, 3
      %p91 = por %p89, %p90
      %p92 = scmp.ne.s32.totalorder %s83, %s84
      %p93 = scmp.eq.s32.totalorder %s17, 0
      %p94 = por %p92, %p93
      %p95 = scmp.ne.s32.totalorder %s83, %s84
      %p96 = scmp.eq.s32.totalorder %s18, 3
      %p97 = por %p95, %p96
      %p99 = scmp.ne.s32.totalorder %s84, %s98
      %p100 = scmp.eq.s32.totalorder %s18, 0
      %p101 = por %p99, %p100
      %s102 = ssub.s32 %s19, %s31
      %s103 = ssub.s32 %s20, %s27
      %s104 = sor.u32 %s102, %s103
      %p105 = scmp.eq.s32.totalorder %s104, 0
      %s107 = sadd.s32 %s106, 1
      %s108 = scalar_select %p105, %s106, %s107
      %p111 = pneg %p105
      %p112 = scmp.eq.s32.totalorder %s12, 3
      %p113 = por %p111, %p112
      %p114 = scmp.ne.s32.totalorder %s106, %s109
      %p115 = scmp.eq.s32.totalorder %s12, 0
      %p116 = por %p114, %p115
      %p117 = scmp.ne.s32.totalorder %s106, %s109
      %p118 = scmp.eq.s32.totalorder %s17, 3
      %p119 = por %p117, %p118
      %p120 = scmp.ne.s32.totalorder %s109, %s110
      %p121 = scmp.eq.s32.totalorder %s17, 0
      %p122 = por %p120, %p121
      %p123 = scmp.ne.s32.totalorder %s109, %s110
      %p124 = scmp.eq.s32.totalorder %s18, 3
      %p125 = por %p123, %p124
      %p127 = scmp.ne.s32.totalorder %s110, %s126
      %p128 = scmp.eq.s32.totalorder %s18, 0
      %p129 = por %p127, %p128
      %p130 = scmp.le.s32.totalorder 1, %s12
      %p131 = scmp.lt.s32.totalorder %s12, 5
      %p132 = pnand %p130, %p131
      %p133 = pneg %p132
      // Predicated region
      $region9: #{tpu_custom_call.1} parent=5 // pred_check
        _
      $region10: #{tpu_custom_call.1} parent=5 // pred_check_branch
        %135 = sbr.rel (%p132) target = $region12
      $region11: #{tpu_custom_call.1} parent=5 // pred_region
        %s136 = ssub.s32 %s12, 1
        // Predicated region
        $region13: #{tpu_custom_call.1} parent=11 // pred_check
          %p137 = pneg %p73
        $region14: #{tpu_custom_call.1} parent=11 // pred_check_branch
          %139 = sbr.rel (%p137) target = $region16
        $region15: #{tpu_custom_call.1} parent=11 // pred_region
          _
        $region16: #{tpu_custom_call.1} parent=11 // pred_fallthru
          _
        // Predicated region
        $region17: #{tpu_custom_call.1} parent=11 // pred_check
          %p140 = pneg %p94
        $region18: #{tpu_custom_call.1} parent=11 // pred_check_branch
          %142 = sbr.rel (%p140) target = $region20
        $region19: #{tpu_custom_call.1} parent=11 // pred_region
          _
        $region20: #{tpu_custom_call.1} parent=11 // pred_fallthru
          _
      $region12: #{tpu_custom_call.1} parent=5 // pred_fallthru
        _
      %p143 = scmp.lt.s32.totalorder %s12, 4
      // Predicated region
      $region21: #{tpu_custom_call.1} parent=5 // pred_check
        %p144 = pneg %p143
      $region22: #{tpu_custom_call.1} parent=5 // pred_check_branch
        %146 = sbr.rel (%p144) target = $region24
      $region23: #{tpu_custom_call.1} parent=5 // pred_region
        // Predicated region
        $region25: #{tpu_custom_call.1} parent=23 // pred_check
          %p147 = pneg %p46
        $region26: #{tpu_custom_call.1} parent=23 // pred_check_branch
          %149 = sbr.rel (%p147) target = $region28
        $region27: #{tpu_custom_call.1} parent=23 // pred_region
          %p150 = scmp.lt.s32.totalorder %s19, 1
          %s151 = scalar_select %p150, %s19, 1
          %p152 = scmp.lt.s32.totalorder %s20, 1
          %s153 = scalar_select %p152, %s20, 1
          %s154 = smul.addr %s151, 2
          %s155 = sadd.s32 %s153, %s154
          %s156 = smul.addr %s155, 4
          %s157 = scalar_lea.vmem %s0, %s156
        $region28: #{tpu_custom_call.1} parent=23 // pred_fallthru
          _
      $region24: #{tpu_custom_call.1} parent=5 // pred_fallthru
        _
      %p158 = scmp.le.s32.totalorder 1, %s12
      %p159 = scmp.lt.s32.totalorder %s12, 5
      %p160 = pnand %p158, %p159
      %p161 = pneg %p160
      // Predicated region
      $region29: #{tpu_custom_call.1} parent=5 // pred_check
        _
      $region30: #{tpu_custom_call.1} parent=5 // pred_check_branch
        %163 = sbr.rel (%p160) target = $region32
      $region31: #{tpu_custom_call.1} parent=5 // pred_region
        %s164 = ssub.s32 %s12, 1
        %p165 = scmp.lt.s32.totalorder %s21, 1
        %s166 = scalar_select %p165, %s21, 1
        %p167 = scmp.lt.s32.totalorder %s22, 1
        %s168 = scalar_select %p167, %s22, 1
        %s169 = smul.addr %s166, 2
        %s170 = sadd.s32 %s168, %s169
        %s171 = smul.addr %s170, 4
        %s172 = scalar_lea.vmem %s0, %s171
        %p173 = pneg %p52
        %p174 = pneg %p49
        %p175 = pneg %p73
        %p176 = pneg %p70
        %p177 = pneg %p94
        %p178 = pneg %p91
        %p179 = pneg %p122
        %p180 = pneg %p119
        %s181 = sand.u32 %s109, 1
        %s182 = scalar_lea.sflag [#allocation3], %s181
        %s183 = sand.u32 %s109, 1
        %s184 = smul.addr %s183, 32
        %s185 = scalar_lea.vmem [#allocation2], %s184
        %p186 = scmp.lt.s32.totalorder %s21, 1
        %s187 = scalar_select %p186, %s21, 1
        %p188 = scmp.lt.s32.totalorder %s22, 1
        %s189 = scalar_select %p188, %s22, 1
        %s190 = smul.addr %s187, 2
        %s191 = sadd.s32 %s189, %s190
        %s192 = smul.addr %s191, 4
        %s193 = scalar_lea.vmem %s0, %s192
        %v194 = vld [vmem:[%s193] sm:$0xf]
        %v195 = vld [vmem:[%s1] sm:$0xff]
        %v196 = vld [vmem:[%s1 + $0x8] sm:$0xff]
        %v197 = vld [vmem:[%s1 + $0x10] sm:$0xff]
        %v198 = vld [vmem:[%s1 + $0x18] sm:$0xff]
        %200 = vset.pattern.permute.xlu0 0
        %201 = vperm.xlu0 %200, %v195
        %v202 = vpop.permute.xlu0 %201
        %205 = vset.pattern.permute.xlu0 0
        %206 = vperm.xlu0 %205, %v196
        %v207 = vpop.permute.xlu0 %206
        %210 = vset.pattern.permute.xlu0 0
        %211 = vperm.xlu0 %210, %v197
        %v212 = vpop.permute.xlu0 %211
        %215 = vset.pattern.permute.xlu0 0
        %216 = vperm.xlu0 %215, %v198
        %v217 = vpop.permute.xlu0 %216
        %v219 = vperm.slane %v194, 0
        %v220 = vmul.f32 %v202, %v219
        %v221 = vmul.f32 %v207, %v219
        %v222 = vmul.f32 %v212, %v219
        %v223 = vmul.f32 %v217, %v219
        %224 = vset.pattern.permute.xlu0 1
        %225 = vperm.xlu0 %224, %v195
        %v226 = vpop.permute.xlu0 %225
        %228 = vset.pattern.permute.xlu0 1
        %229 = vperm.xlu0 %228, %v196
        %v230 = vpop.permute.xlu0 %229
        %232 = vset.pattern.permute.xlu0 1
        %233 = vperm.xlu0 %232, %v197
        %v234 = vpop.permute.xlu0 %233
        %236 = vset.pattern.permute.xlu0 1
        %237 = vperm.xlu0 %236, %v198
        %v238 = vpop.permute.xlu0 %237
        %v240 = vperm.slane %v194, 1
        %v241 = vmul.f32 %v226, %v240
        %v242 = vmul.f32 %v230, %v240
        %v243 = vmul.f32 %v234, %v240
        %v244 = vmul.f32 %v238, %v240
        %245 = vset.pattern.permute.xlu0 2
        %246 = vperm.xlu0 %245, %v195
        %v247 = vpop.permute.xlu0 %246
        %249 = vset.pattern.permute.xlu0 2
        %250 = vperm.xlu0 %249, %v196
        %v251 = vpop.permute.xlu0 %250
        %253 = vset.pattern.permute.xlu0 2
        %254 = vperm.xlu0 %253, %v197
        %v255 = vpop.permute.xlu0 %254
        %257 = vset.pattern.permute.xlu0 2
        %258 = vperm.xlu0 %257, %v198
        %v259 = vpop.permute.xlu0 %258
        %v261 = vperm.slane %v194, 2
        %v262 = vmul.f32 %v247, %v261
        %v263 = vmul.f32 %v251, %v261
        %v264 = vmul.f32 %v255, %v261
        %v265 = vmul.f32 %v259, %v261
        %v266 = vadd.f32 %v220, %v262
        %v267 = vadd.f32 %v221, %v263
        %v268 = vadd.f32 %v222, %v264
        %v269 = vadd.f32 %v223, %v265
        %270 = vset.pattern.permute.xlu0 3
        %271 = vperm.xlu0 %270, %v195
        %v272 = vpop.permute.xlu0 %271
        %274 = vset.pattern.permute.xlu0 3
        %275 = vperm.xlu0 %274, %v196
        %v276 = vpop.permute.xlu0 %275
        %278 = vset.pattern.permute.xlu0 3
        %279 = vperm.xlu0 %278, %v197
        %v280 = vpop.permute.xlu0 %279
        %282 = vset.pattern.permute.xlu0 3
        %283 = vperm.xlu0 %282, %v198
        %v284 = vpop.permute.xlu0 %283
        %v286 = vperm.slane %v194, 3
        %v287 = vmul.f32 %v272, %v286
        %v288 = vmul.f32 %v276, %v286
        %v289 = vmul.f32 %v280, %v286
        %v290 = vmul.f32 %v284, %v286
        %v291 = vadd.f32 %v241, %v287
        %v292 = vadd.f32 %v242, %v288
        %v293 = vadd.f32 %v243, %v289
        %v294 = vadd.f32 %v244, %v290
        %v295 = vadd.f32 %v266, %v291
        %v296 = vadd.f32 %v267, %v292
        %v297 = vadd.f32 %v268, %v293
        %v298 = vadd.f32 %v269, %v294
        %v299 = vld [vmem:[%s2] sm:$0xff]
        %v300 = vld [vmem:[%s2 + $0x8] sm:$0xff]
        %v301 = vld [vmem:[%s2 + $0x10] sm:$0xff]
        %v302 = vld [vmem:[%s2 + $0x18] sm:$0xff]
        %304 = vset.pattern.permute.xlu0 0
        %305 = vperm.xlu0 %304, %v299
        %v306 = vpop.permute.xlu0 %305
        %309 = vset.pattern.permute.xlu0 0
        %310 = vperm.xlu0 %309, %v300
        %v311 = vpop.permute.xlu0 %310
        %314 = vset.pattern.permute.xlu0 0
        %315 = vperm.xlu0 %314, %v301
        %v316 = vpop.permute.xlu0 %315
        %319 = vset.pattern.permute.xlu0 0
        %320 = vperm.xlu0 %319, %v302
        %v321 = vpop.permute.xlu0 %320
        %v323 = vadd.f32 %v295, %v306
        %v324 = vadd.f32 %v296, %v311
        %v325 = vadd.f32 %v297, %v316
        %v326 = vadd.f32 %v298, %v321
        %v327 = vmul.f32 %v323, 0.01
        %v328 = vmul.f32 %v324, 0.01
        %v329 = vmul.f32 %v325, 0.01
        %v330 = vmul.f32 %v326, 0.01
        %v331 = vmax.f32 %v323, %v327
        %v332 = vmax.f32 %v324, %v328
        %v333 = vmax.f32 %v325, %v329
        %v334 = vmax.f32 %v326, %v330
        %335 = vst [vmem:[%s185] sm:$0xff] %v331
        %336 = vst [vmem:[%s185 + $0x8] sm:$0xff] %v332
        %337 = vst [vmem:[%s185 + $0x10] sm:$0xff] %v333
        %338 = vst [vmem:[%s185 + $0x18] sm:$0xff] %v334
        %s339 = sand.u32 %s109, 1
        %s340 = scalar_lea.sflag [#allocation3], %s339
        %s341 = sand.u32 %s109, 1
        %s342 = smul.addr %s341, 32
        %s343 = scalar_lea.vmem [#allocation2], %s342
        // Predicated region
        $region33: #{tpu_custom_call.1} parent=31 // pred_check
          %p344 = pneg %p119
        $region34: #{tpu_custom_call.1} parent=31 // pred_check_branch
          %346 = sbr.rel (%p344) target = $region36
        $region35: #{tpu_custom_call.1} parent=31 // pred_region
          %348 = vsyncadd %s340, 0
          %s349 = smul.addr %s21, 8
          %s350 = sadd.s32 %s22, %s349
          %s351 = smul.addr %s350, 8
          %s352 = scalar_lea.hbm %s3, %s351
          %s353 = sshll.u32 %s343, 4
          %s354 = int_to_ptr.vmem [resolvable:$true] %s353
          %s355 = sshll.u32 %s352, 4
          %s356 = int_to_ptr.hbm [resolvable:$true] %s355
          %361 = dma.vmem_to_hbm [thread:$0]  %s354, 512, %s356, %s340, 128, 256, 8
        $region36: #{tpu_custom_call.1} parent=31 // pred_fallthru
          _
      $region32: #{tpu_custom_call.1} parent=5 // pred_fallthru
        _
      %p362 = scmp.le.s32.totalorder 2, %s12
      // Predicated region
      $region37: #{tpu_custom_call.1} parent=5 // pred_check
        %p363 = pneg %p362
      $region38: #{tpu_custom_call.1} parent=5 // pred_check_branch
        %365 = sbr.rel (%p363) target = $region40
      $region39: #{tpu_custom_call.1} parent=5 // pred_region
        %s366 = ssub.s32 %s12, 2
        // Predicated region
        $region41: #{tpu_custom_call.1} parent=39 // pred_check
          %p367 = pneg %p125
        $region42: #{tpu_custom_call.1} parent=39 // pred_check_branch
          %369 = sbr.rel (%p367) target = $region44
        $region43: #{tpu_custom_call.1} parent=39 // pred_region
          %s370 = sand.u32 %s110, 1
          %s371 = scalar_lea.sflag [#allocation3], %s370
          %s372 = sand.u32 %s110, 1
          %s373 = smul.addr %s372, 32
          %s374 = scalar_lea.vmem [#allocation2], %s373
          %376 = dma.done %s371, 512
        $region44: #{tpu_custom_call.1} parent=39 // pred_fallthru
          _
      $region40: #{tpu_custom_call.1} parent=5 // pred_fallthru
        _
    $region6: #{tpu_custom_call.1} parent=1 // loop_footer
      %s16 = sadd.s32 1, %s12
    $region7: #{tpu_custom_call.1} parent=1 // loop_footer_branch
      %11 = sbr.rel target = $region3
    $region8: #{tpu_custom_call.1} parent=1 // loop_exit
      _
    %377 = vsyncpa [#allocation3], 1
    %s378 = scalar_lea.sflag [#allocation3], 1
    %379 = vsyncpa %s378, 1

</llo_original>
